<compile_context>
chip_gen: v6e
topology: v6e:2x2x1
jax: 0.10.0
libtpu: 0.0.40
codegen_flags: <defaults>
</compile_context>

<pallas_src>
import functools
import math

import jax
import jax.numpy as jnp
import numpy as np
from jax import lax
from jax.experimental import pallas as pl
from jax.experimental.pallas import tpu as pltpu


def _pc_kernel(rep_ref, lam_ref, adjw_ref, negw_ref, rmat_ref, dap_ref,
               posc_ref, rowb_ref, out_ref, *, temperature, T, batch_size):
    """One grid step: T batches x P patches (N = T*P rows).

    rep_ref : (N, Dp)    flattened patch representations (zero-padded lanes).
    lam_ref : (N, P)     lamda rows (lamda[b, p, :] at row b*P + p).
    adjw_ref: (N, N)     static 0/1: same batch & |i-j| == 1.
    negw_ref: (N, N)     static 0/1: same batch & not adjacent & not diagonal.
    rmat_ref: (N, P)     static 0/1: R[j, p] = 1 iff j % P == p.
    dap_ref : (N, P)     static 0/1: |(i % P) - p| <= 1  (diag + adjacent patches).
    posc_ref: (N, 1)     static f32: P - #adjacent(i % P)   (exp(0)=1 terms of pos).
    rowb_ref: (N, 1)     static i32: i // P  (local batch index of each row).
    out_ref : (1, 8, 128) partial-sum block (value replicated across the block).
    """
    # ---- L2 normalize rows (F.normalize eps=1e-12 folded into the clamp) ----
    r = rep_ref[...]                                             # (N, Dp)
    sq = jnp.sum(r * r, axis=-1, keepdims=True)                  # (N, 1)
    rn = r * lax.rsqrt(jnp.maximum(sq, 1e-24))                   # (N, Dp)

    # ---- one block-gram matmul for the whole group of T batches ----
    sim = pl.dot(rn, rn, trans_b=True)                           # (N, N) f32, A @ A^T
    E = jnp.exp(sim * (1.0 / temperature))                       # single exp pass

    # ---- static 0/1 weights + small MXU contractions replace concat/selects ----
    rmat = rmat_ref[...]                                         # (N, P)
    ga = jnp.dot(E * adjw_ref[...], rmat,
                 preferred_element_type=jnp.float32)             # (N, P) adjacent terms
    gn = jnp.dot(E * negw_ref[...], rmat,
                 preferred_element_type=jnp.float32)             # (N, P) negative terms

    # pos_i = sum_{adjacent j} E_ij + (# same-batch non-adjacent j, incl. diag) * exp(0)
    pos = jnp.sum(ga, axis=-1, keepdims=True) + posc_ref[...]    # (N, 1)

    # ---- fused softmax(lamda, -1) ----
    lam = lam_ref[...]                                           # (N, P)
    lam = lam - jnp.max(lam, axis=-1, keepdims=True)
    lam_e = jnp.exp(lam)
    lam_sm = lam_e / jnp.sum(lam_e, axis=-1, keepdims=True)      # (N, P)

    # neg_i = sum_p lam_sm[i,p] * (E at negative columns + exp(0)=1 at diag/adjacent)
    neg = jnp.sum(lam_sm * (gn + dap_ref[...]), axis=-1, keepdims=True)   # (N, 1)

    terms = jnp.log(pos / (pos + neg))                           # (N, 1)

    # ---- zero out rows from padded batches (when B is not a multiple of T) ----
    valid = (pl.program_id(0) * T + rowb_ref[...]) < batch_size  # (N, 1) bool
    partial = jnp.sum(jnp.where(valid, terms, 0.0),
                      axis=(0, 1), keepdims=True)                # (1, 1)

    out_ref[...] = jnp.broadcast_to(partial, (1, 8, 128))


def _build_constants(T, P):
    """All compile-time masks / helper matrices for an (N = T*P)-row group."""
    N = T * P
    rows = np.arange(N)
    pidx = rows % P                       # patch index within its batch
    bidx = rows // P                      # local batch index within the group
    same_b = bidx[:, None] == bidx[None, :]
    band1 = np.abs(rows[:, None] - rows[None, :]) == 1
    diag = rows[:, None] == rows[None, :]
    adjw = (same_b & band1).astype(np.float32)                      # (N, N)
    negw = (same_b & ~band1 & ~diag).astype(np.float32)             # (N, N)
    cols = np.arange(P)
    rmat = (pidx[:, None] == cols[None, :]).astype(np.float32)      # (N, P)
    dap = (np.abs(pidx[:, None] - cols[None, :]) <= 1).astype(np.float32)  # (N, P)
    nadj = (np.abs(pidx[:, None] - cols[None, :]) == 1).sum(-1)     # 1 (endpoints) or 2
    posc = (P - nadj).astype(np.float32).reshape(N, 1)              # (N, 1)
    rowb = bidx.astype(np.int32).reshape(N, 1)                      # (N, 1)
    return adjw, negw, rmat, dap, posc, rowb


def _pick_tile_batches(B, P):
    """Batches per grid step: ~128 rows/step, 8-aligned rows, VMEM-safe, and
    >= 2 grid steps when B allows (so the parallel axis can use both v7x TCs)."""
    step = 8 // math.gcd(P, 8)            # smallest T increment with (T*P) % 8 == 0
    if B <= step:
        return B                          # single step; block equals full array dims
    target = max(step, (max(1, 128 // P) // step) * step)       # ~128 rows per step
    half = max(step, ((-(-B // 2)) // step) * step)              # ensures >= 2 steps
    T = min(target, half)
    # VMEM guard: ~6 live (T*P)^2 f32 temporaries (E, masks, products) must fit
    # comfortably under the v5e 16 MiB scoped default.
    while T > step and 6 * (T * P) * (T * P) * 4 > (12 << 20):
        T -= step
    return T


def patchcontrast_forward(z, lamda, *, win_size, patch_len, temperature):
    """z: (B, win_size, C) float32; lamda: (B, patch_num, patch_num) float32."""
    B, W, C = z.shape
    stride = patch_len
    P = int((win_size - patch_len) / stride + 1) + 1
    assert W == win_size and win_size % patch_len == 0

    # ---- glue: permute -> replication pad -> unfold (size == step == patch_len) ----
    zc = jnp.transpose(z, (0, 2, 1))                                 # (B, C, W)
    zc = jnp.pad(zc, ((0, 0), (0, 0), (0, stride)), mode="edge")     # ReplicationPad1d((0, stride))
    patches = zc.reshape(B, C, P, patch_len)                         # non-overlapping unfold
    rep = jnp.transpose(patches, (0, 2, 3, 1)).reshape(B, P, patch_len * C)
    rep = rep.astype(jnp.float32)
    D = patch_len * C
    Dp = -(-D // 128) * 128               # lane-dense: pad D to a multiple of 128

    # ---- batch tiling: T batches per grid step ----
    T = _pick_tile_batches(B, P)
    S = -(-B // T)                        # ceil(B / T) grid steps
    B_pad = S * T
    lam = lamda.astype(jnp.float32)
    if B_pad != B:
        rep = jnp.pad(rep, ((0, B_pad - B), (0, 0), (0, 0)))
        lam = jnp.pad(lam, ((0, B_pad - B), (0, 0), (0, 0)))
    rep2d = rep.reshape(B_pad * P, D)
    if Dp != D:
        rep2d = jnp.pad(rep2d, ((0, 0), (0, Dp - D)))                # zero cols: norms/dots unchanged
    lam2d = lam.reshape(B_pad * P, P)

    N = T * P
    adjw, negw, rmat, dap, posc, rowb = (jnp.asarray(c) for c in _build_constants(T, P))

    kernel = functools.partial(_pc_kernel, temperature=float(temperature),
                               T=T, batch_size=B)
    const2 = lambda s: (0, 0)             # constant index_map -> DMA'd once, no refetch

    out = pl.pallas_call(
        kernel,
        out_shape=jax.ShapeDtypeStruct((S, 8, 128), jnp.float32),
        grid=(S,),
        in_specs=[
            pl.BlockSpec((N, Dp), lambda s: (s, 0)),   # representations (flattened)
            pl.BlockSpec((N, P), lambda s: (s, 0)),    # lamda rows
            pl.BlockSpec((N, N), const2),              # adjacency weights    (static)
            pl.BlockSpec((N, N), const2),              # negative weights     (static)
            pl.BlockSpec((N, P), const2),              # column one-hot R     (static)
            pl.BlockSpec((N, P), const2),              # diag+adjacent pattern(static)
            pl.BlockSpec((N, 1), const2),              # pos exp(0) counts    (static)
            pl.BlockSpec((N, 1), const2),              # local batch index    (static)
        ],
        out_specs=pl.BlockSpec((1, 8, 128), lambda s: (s, 0, 0)),
        compiler_params=pltpu.CompilerParams(
            dimension_semantics=("parallel",)),
    )(rep2d, lam2d, adjw, negw, rmat, dap, posc, rowb)

    # final reduction + scaling in the wrapper (keeps the grid axis parallel)
    return jnp.sum(out[:, 0, 0]) / (-1.0 * P * B)


def _reference(z, lamda, *, win_size, patch_len, temperature):
    """Pure-JAX mirror of the PyTorch forward, for verification."""
    B, W, C = z.shape
    stride = patch_len
    P = int((win_size - patch_len) / stride + 1) + 1
    zc = jnp.transpose(z, (0, 2, 1))
    zc = jnp.pad(zc, ((0, 0), (0, 0), (0, stride)), mode="edge")
    rep = jnp.transpose(zc.reshape(B, C, P, patch_len), (0, 2, 3, 1)).reshape(B, P, -1)
    rn = rep / jnp.maximum(jnp.linalg.norm(rep, axis=-1, keepdims=True), 1e-12)
    sim = jnp.einsum("bid,bjd->bij", rn, rn)
    eye_m1 = jnp.eye(P - 1)
    left = jnp.zeros((P, P)).at[:-1, 1:].set(eye_m1)
    right = jnp.zeros((P, P)).at[1:, :-1].set(eye_m1)
    adj = left + right
    negm = jnp.ones((P, P)) - (jnp.eye(P) + adj)
    pos = jnp.sum(jnp.exp(sim * adj / temperature), axis=-1)
    lam_sm = jax.nn.softmax(lamda, axis=-1)
    neg = jnp.sum(jnp.exp(sim * negm / temperature) * lam_sm, axis=-1)
    loss = jnp.sum(jnp.log(pos / (pos + neg)))
    return loss / (-1.0 * P * B)


if __name__ == "__main__":
    # module hyper-parameters (small, consistent with the forward)
    batch_size = 2
    win_size = 16
    channels = 4
    patch_len = 4
    temperature = 0.5
    patch_num = int((win_size - patch_len) / patch_len + 1) + 1   # = 5

    key = jax.random.PRNGKey(0)
    z = jax.random.normal(key, (batch_size, win_size, channels), dtype=jnp.float32)
    # deterministic parameter init: lamda = ones (as in the PyTorch __init__)
    lamda = jnp.ones((batch_size, patch_num, patch_num), dtype=jnp.float32)
    # TODO(synk): self.W (nn.Linear) and self.lsoftmax are unused in forward(); not materialized.

    loss = jax.block_until_ready(
        patchcontrast_forward(z, lamda, win_size=win_size,
                              patch_len=patch_len, temperature=temperature))
    ref = jax.block_until_ready(
        _reference(z, lamda, win_size=win_size, patch_len=patch_len,
                   temperature=temperature))
    assert np.allclose(np.asarray(loss), np.asarray(ref), rtol=1e-5, atol=1e-5), (loss, ref)
    print("KERNEL_OK")
</pallas_src>

<mosaic_0001>
module attributes {stable_mosaic.version = 11 : i64} {
  func.func @_pc_kernel(%arg0: i32, %arg1: memref<10x128xf32, #tpu.memory_space<vmem>>, %arg2: memref<10x5xf32, #tpu.memory_space<vmem>>, %arg3: memref<10x10xf32, #tpu.memory_space<vmem>>, %arg4: memref<10x10xf32, #tpu.memory_space<vmem>>, %arg5: memref<10x5xf32, #tpu.memory_space<vmem>>, %arg6: memref<10x5xf32, #tpu.memory_space<vmem>>, %arg7: memref<10x1xf32, #tpu.memory_space<vmem>>, %arg8: memref<10x1xi32, #tpu.memory_space<vmem>>, %arg9: memref<1x8x128xf32, #tpu.memory_space<vmem>>) attributes {dimension_semantics = [#tpu.dimension_semantics<parallel>], iteration_bounds = array<i64: 1>, scalar_prefetch = 0 : i64, scratch_operands = 0 : i64, tpu.core_type = #tpu.core_type<tc>, window_params = [{transform_indices = @transform_0, window_bounds = array<i64: 10, 128>}, {transform_indices = @transform_1, window_bounds = array<i64: 10, 5>}, {pipeline_mode = #tpu.pipeline_mode<synchronous>, transform_indices = @transform_2, window_bounds = array<i64: 10, 10>}, {pipeline_mode = #tpu.pipeline_mode<synchronous>, transform_indices = @transform_3, window_bounds = array<i64: 10, 10>}, {pipeline_mode = #tpu.pipeline_mode<synchronous>, transform_indices = @transform_4, window_bounds = array<i64: 10, 5>}, {pipeline_mode = #tpu.pipeline_mode<synchronous>, transform_indices = @transform_5, window_bounds = array<i64: 10, 5>}, {pipeline_mode = #tpu.pipeline_mode<synchronous>, transform_indices = @transform_6, window_bounds = array<i64: 10, 1>}, {pipeline_mode = #tpu.pipeline_mode<synchronous>, transform_indices = @transform_7, window_bounds = array<i64: 10, 1>}, {transform_indices = @transform_8, window_bounds = array<i64: 1, 8, 128>}]} {
    %c0 = arith.constant 0 : index
    %c0_0 = arith.constant 0 : index
    %0 = vector.load %arg1[%c0, %c0_0] : memref<10x128xf32, #tpu.memory_space<vmem>>, vector<10x128xf32>
    %1 = arith.mulf %0, %0 : vector<10x128xf32>
    %cst = arith.constant dense<0.000000e+00> : vector<10xf32>
    %2 = vector.multi_reduction <add>, %1, %cst [1] : vector<10x128xf32> to vector<10xf32>
    %3 = vector.shape_cast %2 : vector<10xf32> to vector<10x1xf32>
    %cst_1 = arith.constant 1.000000e-24 : f32
    %4 = vector.broadcast %cst_1 : f32 to vector<10x1xf32>
    %5 = arith.maximumf %3, %4 : vector<10x1xf32>
    %6 = math.rsqrt %5 : vector<10x1xf32>
    %7 = vector.broadcast %6 : vector<10x1xf32> to vector<10x128xf32>
    %8 = arith.mulf %0, %7 : vector<10x128xf32>
    %cst_2 = arith.constant dense<0.000000e+00> : vector<10x10xf32>
    %9 = tpu.matmul %8, %8, %cst_2 {dimension_numbers = #tpu.dot_dimension_numbers<[1], [1], [0], [0], [0, 0, 1, 0], [], []>} : vector<10x128xf32>, vector<10x128xf32>, vector<10x10xf32> -> vector<10x10xf32>
    %cst_3 = arith.constant 2.000000e+00 : f32
    %10 = vector.broadcast %cst_3 : f32 to vector<10x10xf32>
    %11 = arith.mulf %9, %10 : vector<10x10xf32>
    %12 = math.exp %11 : vector<10x10xf32>
    %c0_4 = arith.constant 0 : index
    %c0_5 = arith.constant 0 : index
    %13 = vector.load %arg5[%c0_4, %c0_5] : memref<10x5xf32, #tpu.memory_space<vmem>>, vector<10x5xf32>
    %c0_6 = arith.constant 0 : index
    %c0_7 = arith.constant 0 : index
    %14 = vector.load %arg3[%c0_6, %c0_7] : memref<10x10xf32, #tpu.memory_space<vmem>>, vector<10x10xf32>
    %15 = arith.mulf %12, %14 : vector<10x10xf32>
    %cst_8 = arith.constant dense<0.000000e+00> : vector<10x5xf32>
    %16 = tpu.matmul %15, %13, %cst_8 {dimension_numbers = #tpu.dot_dimension_numbers<[1], [0], [0], [1], [0, 0, 1, 1], [], []>} : vector<10x10xf32>, vector<10x5xf32>, vector<10x5xf32> -> vector<10x5xf32>
    %c0_9 = arith.constant 0 : index
    %c0_10 = arith.constant 0 : index
    %17 = vector.load %arg4[%c0_9, %c0_10] : memref<10x10xf32, #tpu.memory_space<vmem>>, vector<10x10xf32>
    %18 = arith.mulf %12, %17 : vector<10x10xf32>
    %cst_11 = arith.constant dense<0.000000e+00> : vector<10x5xf32>
    %19 = tpu.matmul %18, %13, %cst_11 {dimension_numbers = #tpu.dot_dimension_numbers<[1], [0], [0], [1], [0, 0, 1, 1], [], []>} : vector<10x10xf32>, vector<10x5xf32>, vector<10x5xf32> -> vector<10x5xf32>
    %cst_12 = arith.constant dense<0.000000e+00> : vector<10xf32>
    %20 = vector.multi_reduction <add>, %16, %cst_12 [1] : vector<10x5xf32> to vector<10xf32>
    %21 = vector.shape_cast %20 : vector<10xf32> to vector<10x1xf32>
    %c0_13 = arith.constant 0 : index
    %c0_14 = arith.constant 0 : index
    %22 = vector.load %arg7[%c0_13, %c0_14] : memref<10x1xf32, #tpu.memory_space<vmem>>, vector<10x1xf32>
    %23 = arith.addf %21, %22 : vector<10x1xf32>
    %c0_15 = arith.constant 0 : index
    %c0_16 = arith.constant 0 : index
    %24 = vector.load %arg2[%c0_15, %c0_16] : memref<10x5xf32, #tpu.memory_space<vmem>>, vector<10x5xf32>
    %cst_17 = arith.constant dense<0xFF800000> : vector<10xf32>
    %25 = vector.multi_reduction <maximumf>, %24, %cst_17 [1] : vector<10x5xf32> to vector<10xf32>
    %26 = vector.shape_cast %25 : vector<10xf32> to vector<10x1xf32>
    %27 = vector.broadcast %26 : vector<10x1xf32> to vector<10x5xf32>
    %28 = arith.subf %24, %27 : vector<10x5xf32>
    %29 = math.exp %28 : vector<10x5xf32>
    %cst_18 = arith.constant dense<0.000000e+00> : vector<10xf32>
    %30 = vector.multi_reduction <add>, %29, %cst_18 [1] : vector<10x5xf32> to vector<10xf32>
    %31 = vector.shape_cast %30 : vector<10xf32> to vector<10x1xf32>
    %32 = vector.broadcast %31 : vector<10x1xf32> to vector<10x5xf32>
    %33 = arith.divf %29, %32 : vector<10x5xf32>
    %c0_19 = arith.constant 0 : index
    %c0_20 = arith.constant 0 : index
    %34 = vector.load %arg6[%c0_19, %c0_20] : memref<10x5xf32, #tpu.memory_space<vmem>>, vector<10x5xf32>
    %35 = arith.addf %19, %34 : vector<10x5xf32>
    %36 = arith.mulf %33, %35 : vector<10x5xf32>
    %cst_21 = arith.constant dense<0.000000e+00> : vector<10xf32>
    %37 = vector.multi_reduction <add>, %36, %cst_21 [1] : vector<10x5xf32> to vector<10xf32>
    %38 = vector.shape_cast %37 : vector<10xf32> to vector<10x1xf32>
    %39 = arith.addf %23, %38 : vector<10x1xf32>
    %40 = arith.divf %23, %39 : vector<10x1xf32>
    %41 = math.log %40 : vector<10x1xf32>
    %c2_i32 = arith.constant 2 : i32
    %42 = arith.muli %arg0, %c2_i32 : i32
    %c0_22 = arith.constant 0 : index
    %c0_23 = arith.constant 0 : index
    %43 = vector.load %arg8[%c0_22, %c0_23] : memref<10x1xi32, #tpu.memory_space<vmem>>, vector<10x1xi32>
    %44 = vector.broadcast %42 : i32 to vector<10x1xi32>
    %45 = arith.addi %44, %43 : vector<10x1xi32>
    %c2_i32_24 = arith.constant 2 : i32
    %46 = vector.broadcast %c2_i32_24 : i32 to vector<10x1xi32>
    %47 = arith.cmpi slt, %45, %46 : vector<10x1xi32>
    %cst_25 = arith.constant 0.000000e+00 : f32
    %48 = vector.broadcast %cst_25 : f32 to vector<10x1xf32>
    %49 = arith.select %47, %41, %48 : vector<10x1xi1>, vector<10x1xf32>
    %50 = vector.shape_cast %49 : vector<10x1xf32> to vector<1x10x1xf32>
    %cst_26 = arith.constant dense<0.000000e+00> : vector<1xf32>
    %51 = vector.multi_reduction <add>, %50, %cst_26 [1, 2] : vector<1x10x1xf32> to vector<1xf32>
    %52 = vector.shape_cast %51 : vector<1xf32> to vector<1x1x1xf32>
    %53 = vector.extract %52[0, 0, 0] : f32 from vector<1x1x1xf32>
    %54 = vector.broadcast %53 : f32 to vector<1x1xf32>
    %55 = vector.shape_cast %54 : vector<1x1xf32> to vector<1x1x1xf32>
    %56 = vector.broadcast %55 : vector<1x1x1xf32> to vector<1x8x128xf32>
    %c0_27 = arith.constant 0 : index
    %c0_28 = arith.constant 0 : index
    %c0_29 = arith.constant 0 : index
    %57 = vector.load %arg9[%c0_27, %c0_28, %c0_29] : memref<1x8x128xf32, #tpu.memory_space<vmem>>, vector<1x8x128xf32>
    tpu.vector_store %arg9[%c0_27, %c0_28, %c0_29], %56 {strides = array<i32>} : memref<1x8x128xf32, #tpu.memory_space<vmem>>, vector<1x8x128xf32>,
    return
  }
  func.func @transform_0(%arg0: i32) -> (i32, i32) {
    %c0_i32 = arith.constant 0 : i32
    %c0_i32_0 = arith.constant 0 : i32
    return %arg0, %c0_i32 : i32, i32
  }
  func.func @transform_1(%arg0: i32) -> (i32, i32) {
    %c0_i32 = arith.constant 0 : i32
    %c0_i32_0 = arith.constant 0 : i32
    return %arg0, %c0_i32 : i32, i32
  }
  func.func @transform_2(%arg0: i32) -> (i32, i32) {
    %c0_i32 = arith.constant 0 : i32
    %c0_i32_0 = arith.constant 0 : i32
    %c0_i32_1 = arith.constant 0 : i32
    return %c0_i32, %c0_i32_0 : i32, i32
  }
  func.func @transform_3(%arg0: i32) -> (i32, i32) {
    %c0_i32 = arith.constant 0 : i32
    %c0_i32_0 = arith.constant 0 : i32
    %c0_i32_1 = arith.constant 0 : i32
    return %c0_i32, %c0_i32_0 : i32, i32
  }
  func.func @transform_4(%arg0: i32) -> (i32, i32) {
    %c0_i32 = arith.constant 0 : i32
    %c0_i32_0 = arith.constant 0 : i32
    %c0_i32_1 = arith.constant 0 : i32
    return %c0_i32, %c0_i32_0 : i32, i32
  }
  func.func @transform_5(%arg0: i32) -> (i32, i32) {
    %c0_i32 = arith.constant 0 : i32
    %c0_i32_0 = arith.constant 0 : i32
    %c0_i32_1 = arith.constant 0 : i32
    return %c0_i32, %c0_i32_0 : i32, i32
  }
  func.func @transform_6(%arg0: i32) -> (i32, i32) {
    %c0_i32 = arith.constant 0 : i32
    %c0_i32_0 = arith.constant 0 : i32
    %c0_i32_1 = arith.constant 0 : i32
    return %c0_i32, %c0_i32_0 : i32, i32
  }
  func.func @transform_7(%arg0: i32) -> (i32, i32) {
    %c0_i32 = arith.constant 0 : i32
    %c0_i32_0 = arith.constant 0 : i32
    %c0_i32_1 = arith.constant 0 : i32
    return %c0_i32, %c0_i32_0 : i32, i32
  }
  func.func @transform_8(%arg0: i32) -> (i32, i32, i32) {
    %c0_i32 = arith.constant 0 : i32
    %c0_i32_0 = arith.constant 0 : i32
    %c0_i32_1 = arith.constant 0 : i32
    return %arg0, %c0_i32, %c0_i32_0 : i32, i32, i32
  }
}

</mosaic_0001>

<llo_original>
// kernel: tpu_custom_call.1
$region0: #{tpu_custom_call.1}
  #allocation0 [shape = 'u32[]', space=smem, size = 0x4, offset = 0x4, fixed_abs, tag = 'smem constant byte address 0x4 - core index']
  #allocation1 [shape = 'u32[144,128]{1,0:T(1,128)}', space=vmem, size = 0x12000, scoped, tag = 'internal scratch']
  %s0 = inlined_call_operand.vmem [shape: f32[10,128], index: 0, kind: input, shape index: {}]
  %s1 = inlined_call_operand.vmem [shape: f32[10,5], index: 1, kind: input, shape index: {}]
  %s2 = inlined_call_operand.vmem [shape: f32[10,10], index: 2, kind: input, shape index: {}]
  %s3 = inlined_call_operand.vmem [shape: f32[10,10], index: 3, kind: input, shape index: {}]
  %s4 = inlined_call_operand.vmem [shape: f32[10,5], index: 4, kind: input, shape index: {}]
  %s5 = inlined_call_operand.vmem [shape: f32[10,5], index: 5, kind: input, shape index: {}]
  %s6 = inlined_call_operand.vmem [shape: f32[10,1], index: 6, kind: input, shape index: {}]
  %s7 = inlined_call_operand.vmem [shape: s32[10,1], index: 7, kind: input, shape index: {}]
  %s8 = inlined_call_operand.hbm [shape: f32[1,8,128], index: 8, kind: output, shape index: {}]
  %s9 = sld [smem:[#allocation0]]
  $region42: #{tpu_custom_call.1} parent=0
    _
  %s11 = ssub.s32 1, %s9
  %s12 = scalar_select 0, %s11, %s9
  $region1: #{tpu_custom_call.1} parent=0
    #allocation2 [shape = 'u8[4096]{0}', space=vmem, size = 0x1000, scoped, tag = 'output window, operand 0, single buffered']
    #allocation3 [shape = 's32[1]{0}', space=sflag, size = 0x4, scoped, tag = 'scoped memory for tpu_custom_call.1']
    %13 = vsyncpa [#allocation3], 0
    // Predicated region
    $region2: #{tpu_custom_call.1} parent=1 // pred_check
      _
    $region3: #{tpu_custom_call.1} parent=1 // pred_check_branch
      %15 = sbr.rel (0) target = $region5
    $region4: #{tpu_custom_call.1} parent=1 // pred_region
      _
    $region5: #{tpu_custom_call.1} parent=1 // pred_fallthru
      _
    // Predicated region
    $region6: #{tpu_custom_call.1} parent=1 // pred_check
      _
    $region7: #{tpu_custom_call.1} parent=1 // pred_check_branch
      %17 = sbr.rel (0) target = $region9
    $region8: #{tpu_custom_call.1} parent=1 // pred_region
      _
    $region9: #{tpu_custom_call.1} parent=1 // pred_fallthru
      _
    // Predicated region
    $region10: #{tpu_custom_call.1} parent=1 // pred_check
      _
    $region11: #{tpu_custom_call.1} parent=1 // pred_check_branch
      %19 = sbr.rel (0) target = $region13
    $region12: #{tpu_custom_call.1} parent=1 // pred_region
      _
    $region13: #{tpu_custom_call.1} parent=1 // pred_fallthru
      _
    // Predicated region
    $region14: #{tpu_custom_call.1} parent=1 // pred_check
      _
    $region15: #{tpu_custom_call.1} parent=1 // pred_check_branch
      %21 = sbr.rel (0) target = $region17
    $region16: #{tpu_custom_call.1} parent=1 // pred_region
      _
    $region17: #{tpu_custom_call.1} parent=1 // pred_fallthru
      _
    // Predicated region
    $region18: #{tpu_custom_call.1} parent=1 // pred_check
      _
    $region19: #{tpu_custom_call.1} parent=1 // pred_check_branch
      %23 = sbr.rel (0) target = $region21
    $region20: #{tpu_custom_call.1} parent=1 // pred_region
      _
    $region21: #{tpu_custom_call.1} parent=1 // pred_fallthru
      _
    // Predicated region
    $region22: #{tpu_custom_call.1} parent=1 // pred_check
      _
    $region23: #{tpu_custom_call.1} parent=1 // pred_check_branch
      %25 = sbr.rel (0) target = $region25
    $region24: #{tpu_custom_call.1} parent=1 // pred_region
      _
    $region25: #{tpu_custom_call.1} parent=1 // pred_fallthru
      _
    // Predicated region
    $region26: #{tpu_custom_call.1} parent=1 // pred_check
      _
    $region27: #{tpu_custom_call.1} parent=1 // pred_check_branch
      %27 = sbr.rel (0) target = $region29
    $region28: #{tpu_custom_call.1} parent=1 // pred_region
      _
    $region29: #{tpu_custom_call.1} parent=1 // pred_fallthru
      _
    // Predicated region
    $region30: #{tpu_custom_call.1} parent=1 // pred_check
      _
    $region31: #{tpu_custom_call.1} parent=1 // pred_check_branch
      %29 = sbr.rel (0) target = $region33
    $region32: #{tpu_custom_call.1} parent=1 // pred_region
      _
    $region33: #{tpu_custom_call.1} parent=1 // pred_fallthru
      _
    %v30 = vld [vmem:[%s0] sm:$0xff]
    %v31 = vld [vmem:[%s0 + $0x8] sm:$0x3]
    %v32 = vmul.f32 %v30, %v30
    %v33 = vmul.f32 %v31, %v31
    %34 = vadd.xlane.f32.xlu0 %v32
    %v35 = vpop.xlane.xlu0 %34
    %vm36 = vcmask 1041408
    %v37 = vsel %vm36, %v33, 0.0
    %38 = vadd.xlane.f32.xlu0 %v37
    %v39 = vpop.xlane.xlu0 %38
    %v40 = vmax.f32 %v35, 1e-24
    %v41 = vmax.f32 %v39, 1e-24
    %v42 = vrsqrt.pop %v40
    %v43 = vrsqrt.pop %v41
    %v44 = vmul.f32 %v30, %v42
    %v45 = vmul.f32 %v31, %v43
    %46 = vmatprep.subr.mxu0 0.0
    %47 = vmatpush1.xpose.msra.mxu0 0.0
    %48 = vmatprep.subr.mxu0 0.0
    %49 = vmatpush1.xpose.msra.mxu0 0.0
    %50 = vmatprep.subr.mxu0 0.0
    %51 = vmatpush1.xpose.msra.mxu0 0.0
    %52 = vmatprep.subr.mxu0 0.0
    %53 = vmatpush1.xpose.msra.mxu0 0.0
    %54 = vmatprep.subr.mxu0 0.0
    %55 = vmatpush1.xpose.msra.mxu0 0.0
    %56 = vmatprep.subr.mxu0 0.0
    %57 = vmatpush1.xpose.msra.mxu0 0.0
    %58 = vmatprep.subr.mxu0 0.0
    %59 = vmatpush1.xpose.msra.mxu0 0.0
    %60 = vmatprep.subr.mxu0 0.0
    %61 = vmatpush1.xpose.msra.mxu0 0.0
    %62 = vmatprep.subr.mxu0 0.0
    %63 = vmatpush1.xpose.msra.mxu0 0.0
    %64 = vmatprep.subr.mxu0 0.0
    %65 = vmatpush1.xpose.msra.mxu0 0.0
    %66 = vmatprep.subr.mxu0 0.0
    %67 = vmatpush1.xpose.msra.mxu0 0.0
    %68 = vmatprep.subr.mxu0 0.0
    %69 = vmatpush1.xpose.msra.mxu0 0.0
    %70 = vmatprep.subr.mxu0 0.0
    %71 = vmatpush1.xpose.msra.mxu0 0.0
    %72 = vmatprep.subr.mxu0 0.0
    %73 = vmatpush1.xpose.msra.mxu0 0.0
    %74 = vmatprep.subr.mxu0 0.0
    %75 = vmatpush1.xpose.msra.mxu0 %v45
    %76 = vmatprep.subr.mxu0 0.0
    %77 = vmatpush1.xpose.msra.mxu0 %v44
    %78 = vmatprep.subr.mxu0 0.0
    %79 = vmatpush2.xpose.msra.mxu0 0.0
    %80 = vmatprep.subr.mxu0 0.0
    %81 = vmatpush2.xpose.msra.mxu0 0.0
    %82 = vmatprep.subr.mxu0 0.0
    %83 = vmatpush2.xpose.msra.mxu0 0.0
    %84 = vmatprep.subr.mxu0 0.0
    %85 = vmatpush2.xpose.msra.mxu0 0.0
    %86 = vmatprep.subr.mxu0 0.0
    %87 = vmatpush2.xpose.msra.mxu0 0.0
    %88 = vmatprep.subr.mxu0 0.0
    %89 = vmatpush2.xpose.msra.mxu0 0.0
    %90 = vmatprep.subr.mxu0 0.0
    %91 = vmatpush2.xpose.msra.mxu0 0.0
    %92 = vmatprep.subr.mxu0 0.0
    %93 = vmatpush2.xpose.msra.mxu0 0.0
    %94 = vmatprep.subr.mxu0 0.0
    %95 = vmatpush2.xpose.msra.mxu0 0.0
    %96 = vmatprep.subr.mxu0 0.0
    %97 = vmatpush2.xpose.msra.mxu0 0.0
    %98 = vmatprep.subr.mxu0 0.0
    %99 = vmatpush2.xpose.msra.mxu0 0.0
    %100 = vmatprep.subr.mxu0 0.0
    %101 = vmatpush2.xpose.msra.mxu0 0.0
    %102 = vmatprep.subr.mxu0 0.0
    %103 = vmatpush2.xpose.msra.mxu0 0.0
    %104 = vmatprep.subr.mxu0 0.0
    %105 = vmatpush2.xpose.msra.mxu0 0.0
    %106 = vmatprep.subr.mxu0 0.0
    %107 = vmatpush2.xpose.msra.mxu0 0.0
    %108 = vmatprep.subr.mxu0 0.0
    %109 = vmatpush2.xpose.msra.mxu0 0.0
    %110 = vmatprep.mubr.f32.mxu0 0.0
    %111 = vmatmul.mubr.f32.gmra.mxu0 %v44
    %v112 = vpop.f32.mrf.mxu0
    %v113 = vadd.f32 0.0, %v112
    %v114 = vpop.f32.mrf.mxu0
    %115 = vmatprep.mubr.f32.mxu0 0.0
    %116 = vmatmul.mubr.f32.gmra.mxu0 %v45
    %v117 = vpop.f32.mrf.mxu0
    %v118 = vadd.f32 0.0, %v117
    %v119 = vpop.f32.mrf.mxu0
    %120 = vdwg.mxu0
    %v121 = vmul.f32 %v113, 2.0
    %v122 = vmul.f32 %v118, 2.0
    %v123 = vmul.f32 %v121, 1.442695
    %v124 = vpow.pop %v123
    %v125 = vmul.f32 %v122, 1.442695
    %v126 = vpow.pop %v125
    %v127 = vld [vmem:[%s4] sm:$0xff]
    %v128 = vld [vmem:[%s4 + $0x8] sm:$0x3]
    %v129 = vld [vmem:[%s2] sm:$0xff]
    %v130 = vld [vmem:[%s2 + $0x8] sm:$0x3]
    %v131 = vmul.f32 %v124, %v129
    %v132 = vmul.f32 %v126, %v130
    %vm133 = vcmask 80896
    %v135 = vsel %vm133, %v131, 0
    %v138 = vsel %vm133, %v132, 0
    %v141 = vsel %vm36, %v128, 0
    %143 = vmatprep.subr.mxu0 0.0
    %144 = vmatpush1.msra.mxu0 0.0
    %145 = vmatprep.subr.mxu0 0.0
    %146 = vmatpush1.msra.mxu0 0.0
    %147 = vmatprep.subr.mxu0 0.0
    %148 = vmatpush1.msra.mxu0 0.0
    %149 = vmatprep.subr.mxu0 0.0
    %150 = vmatpush1.msra.mxu0 0.0
    %151 = vmatprep.subr.mxu0 0.0
    %152 = vmatpush1.msra.mxu0 0.0
    %153 = vmatprep.subr.mxu0 0.0
    %154 = vmatpush1.msra.mxu0 0.0
    %155 = vmatprep.subr.mxu0 0.0
    %156 = vmatpush1.msra.mxu0 0.0
    %157 = vmatprep.subr.mxu0 0.0
    %158 = vmatpush1.msra.mxu0 0.0
    %159 = vmatprep.subr.mxu0 0.0
    %160 = vmatpush1.msra.mxu0 0.0
    %161 = vmatprep.subr.mxu0 0.0
    %162 = vmatpush1.msra.mxu0 0.0
    %163 = vmatprep.subr.mxu0 0.0
    %164 = vmatpush1.msra.mxu0 0.0
    %165 = vmatprep.subr.mxu0 0.0
    %166 = vmatpush1.msra.mxu0 0.0
    %167 = vmatprep.subr.mxu0 0.0
    %168 = vmatpush1.msra.mxu0 0.0
    %169 = vmatprep.subr.mxu0 0.0
    %170 = vmatpush1.msra.mxu0 0.0
    %171 = vmatprep.subr.mxu0 0.0
    %172 = vmatpush1.msra.mxu0 %v141
    %173 = vmatprep.subr.mxu0 0.0
    %174 = vmatpush1.msra.mxu0 %v127
    %175 = vmatprep.subr.mxu0 0.0
    %176 = vmatpush2.msra.mxu0 0.0
    %177 = vmatprep.subr.mxu0 0.0
    %178 = vmatpush2.msra.mxu0 0.0
    %179 = vmatprep.subr.mxu0 0.0
    %180 = vmatpush2.msra.mxu0 0.0
    %181 = vmatprep.subr.mxu0 0.0
    %182 = vmatpush2.msra.mxu0 0.0
    %183 = vmatprep.subr.mxu0 0.0
    %184 = vmatpush2.msra.mxu0 0.0
    %185 = vmatprep.subr.mxu0 0.0
    %186 = vmatpush2.msra.mxu0 0.0
    %187 = vmatprep.subr.mxu0 0.0
    %188 = vmatpush2.msra.mxu0 0.0
    %189 = vmatprep.subr.mxu0 0.0
    %190 = vmatpush2.msra.mxu0 0.0
    %191 = vmatprep.subr.mxu0 0.0
    %192 = vmatpush2.msra.mxu0 0.0
    %193 = vmatprep.subr.mxu0 0.0
    %194 = vmatpush2.msra.mxu0 0.0
    %195 = vmatprep.subr.mxu0 0.0
    %196 = vmatpush2.msra.mxu0 0.0
    %197 = vmatprep.subr.mxu0 0.0
    %198 = vmatpush2.msra.mxu0 0.0
    %199 = vmatprep.subr.mxu0 0.0
    %200 = vmatpush2.msra.mxu0 0.0
    %201 = vmatprep.subr.mxu0 0.0
    %202 = vmatpush2.msra.mxu0 0.0
    %203 = vmatprep.subr.mxu0 0.0
    %204 = vmatpush2.msra.mxu0 0.0
    %205 = vmatprep.subr.mxu0 0.0
    %206 = vmatpush2.msra.mxu0 0.0
    %207 = vmatprep.mubr.f32.mxu0 0.0
    %208 = vmatmul.mubr.f32.gmra.mxu0 %v135
    %v209 = vpop.f32.mrf.mxu0
    %v210 = vadd.f32 0.0, %v209
    %v211 = vpop.f32.mrf.mxu0
    %212 = vmatprep.mubr.f32.mxu0 0.0
    %213 = vmatmul.mubr.f32.gmra.mxu0 %v138
    %v214 = vpop.f32.mrf.mxu0
    %v215 = vadd.f32 0.0, %v214
    %v216 = vpop.f32.mrf.mxu0
    %217 = vdwg.mxu0
    %v218 = vld [vmem:[%s3] sm:$0xff]
    %v219 = vld [vmem:[%s3 + $0x8] sm:$0x3]
    %v220 = vmul.f32 %v124, %v218
    %v221 = vmul.f32 %v126, %v219
    %vm222 = vcmask 39936
    %v223 = vsel %vm222, %v210, 0.0
    %224 = vadd.xlane.f32.xlu0 %v223
    %v225 = vpop.xlane.xlu0 %224
    %vm226 = vcmask 33792
    %v227 = vsel %vm226, %v215, 0.0
    %228 = vadd.xlane.f32.xlu0 %v227
    %v229 = vpop.xlane.xlu0 %228
    %v230 = vld [vmem:[%s6] sm:$0xff]
    %v231 = vld [vmem:[%s6 + $0x8] sm:$0x3]
    %v232 = vadd.f32 %v225, %v230
    %v233 = vadd.f32 %v229, %v231
    %v234 = vld [vmem:[%s1] sm:$0xff]
    %v235 = vld [vmem:[%s1 + $0x8] sm:$0x3]
    %v236 = vsel %vm222, %v234, -inf
    %237 = vmax.xlane.f32.xlu0 %v236
    %v238 = vpop.xlane.xlu0 %237
    %v239 = vsel %vm226, %v235, -inf
    %240 = vmax.xlane.f32.xlu0 %v239
    %v241 = vpop.xlane.xlu0 %240
    %v242 = vsub.f32 %v234, %v238
    %v243 = vsub.f32 %v235, %v241
    %v244 = vmul.f32 %v242, 1.442695
    %v245 = vpow.pop %v244
    %v246 = vmul.f32 %v243, 1.442695
    %v247 = vpow.pop %v246
    %v248 = vsel %vm222, %v245, 0.0
    %249 = vadd.xlane.f32.xlu0 %v248
    %v250 = vpop.xlane.xlu0 %249
    %v251 = vsel %vm226, %v247, 0.0
    %252 = vadd.xlane.f32.xlu0 %v251
    %v253 = vpop.xlane.xlu0 %252
    %v254 = vrcp.pop %v250
    %v255 = vmul.f32 %v245, %v254
    %v256 = vrcp.pop %v253
    %v257 = vmul.f32 %v247, %v256
    %v258 = vld [vmem:[%s5] sm:$0xff]
    %v259 = vld [vmem:[%s5 + $0x8] sm:$0x3]
    %v261 = vsel %vm133, %v220, 0
    %v264 = vsel %vm133, %v221, 0
    %266 = vmatprep.subr.mxu0 0.0
    %267 = vmatpush1.msra.mxu0 0.0
    %268 = vmatprep.subr.mxu0 0.0
    %269 = vmatpush1.msra.mxu0 0.0
    %270 = vmatprep.subr.mxu0 0.0
    %271 = vmatpush1.msra.mxu0 0.0
    %272 = vmatprep.subr.mxu0 0.0
    %273 = vmatpush1.msra.mxu0 0.0
    %274 = vmatprep.subr.mxu0 0.0
    %275 = vmatpush1.msra.mxu0 0.0
    %276 = vmatprep.subr.mxu0 0.0
    %277 = vmatpush1.msra.mxu0 0.0
    %278 = vmatprep.subr.mxu0 0.0
    %279 = vmatpush1.msra.mxu0 0.0
    %280 = vmatprep.subr.mxu0 0.0
    %281 = vmatpush1.msra.mxu0 0.0
    %282 = vmatprep.subr.mxu0 0.0
    %283 = vmatpush1.msra.mxu0 0.0
    %284 = vmatprep.subr.mxu0 0.0
    %285 = vmatpush1.msra.mxu0 0.0
    %286 = vmatprep.subr.mxu0 0.0
    %287 = vmatpush1.msra.mxu0 0.0
    %288 = vmatprep.subr.mxu0 0.0
    %289 = vmatpush1.msra.mxu0 0.0
    %290 = vmatprep.subr.mxu0 0.0
    %291 = vmatpush1.msra.mxu0 0.0
    %292 = vmatprep.subr.mxu0 0.0
    %293 = vmatpush1.msra.mxu0 0.0
    %294 = vmatprep.subr.mxu0 0.0
    %295 = vmatpush1.msra.mxu0 %v141
    %296 = vmatprep.subr.mxu0 0.0
    %297 = vmatpush1.msra.mxu0 %v127
    %298 = vmatprep.subr.mxu0 0.0
    %299 = vmatpush2.msra.mxu0 0.0
    %300 = vmatprep.subr.mxu0 0.0
    %301 = vmatpush2.msra.mxu0 0.0
    %302 = vmatprep.subr.mxu0 0.0
    %303 = vmatpush2.msra.mxu0 0.0
    %304 = vmatprep.subr.mxu0 0.0
    %305 = vmatpush2.msra.mxu0 0.0
    %306 = vmatprep.subr.mxu0 0.0
    %307 = vmatpush2.msra.mxu0 0.0
    %308 = vmatprep.subr.mxu0 0.0
    %309 = vmatpush2.msra.mxu0 0.0
    %310 = vmatprep.subr.mxu0 0.0
    %311 = vmatpush2.msra.mxu0 0.0
    %312 = vmatprep.subr.mxu0 0.0
    %313 = vmatpush2.msra.mxu0 0.0
    %314 = vmatprep.subr.mxu0 0.0
    %315 = vmatpush2.msra.mxu0 0.0
    %316 = vmatprep.subr.mxu0 0.0
    %317 = vmatpush2.msra.mxu0 0.0
    %318 = vmatprep.subr.mxu0 0.0
    %319 = vmatpush2.msra.mxu0 0.0
    %320 = vmatprep.subr.mxu0 0.0
    %321 = vmatpush2.msra.mxu0 0.0
    %322 = vmatprep.subr.mxu0 0.0
    %323 = vmatpush2.msra.mxu0 0.0
    %324 = vmatprep.subr.mxu0 0.0
    %325 = vmatpush2.msra.mxu0 0.0
    %326 = vmatprep.subr.mxu0 0.0
    %327 = vmatpush2.msra.mxu0 0.0
    %328 = vmatprep.subr.mxu0 0.0
    %329 = vmatpush2.msra.mxu0 0.0
    %330 = vmatprep.mubr.f32.mxu0 0.0
    %331 = vmatmul.mubr.f32.gmra.mxu0 %v261
    %v332 = vpop.f32.mrf.mxu0
    %v333 = vadd.f32 %v258, %v332
    %v334 = vpop.f32.mrf.mxu0
    %335 = vmatprep.mubr.f32.mxu0 0.0
    %336 = vmatmul.mubr.f32.gmra.mxu0 %v264
    %v337 = vpop.f32.mrf.mxu0
    %v338 = vadd.f32 %v259, %v337
    %v339 = vpop.f32.mrf.mxu0
    %340 = vdwg.mxu0
    %v341 = vmul.f32 %v255, %v333
    %v342 = vmul.f32 %v257, %v338
    %v343 = vsel %vm222, %v341, 0.0
    %344 = vadd.xlane.f32.xlu0 %v343
    %v345 = vpop.xlane.xlu0 %344
    %v346 = vsel %vm226, %v342, 0.0
    %347 = vadd.xlane.f32.xlu0 %v346
    %v348 = vpop.xlane.xlu0 %347
    %v349 = vadd.f32 %v232, %v345
    %v350 = vadd.f32 %v233, %v348
    %v351 = vrcp.pop %v349
    %v352 = vmul.f32 %v232, %v351
    %v353 = vrcp.pop %v350
    %v354 = vmul.f32 %v233, %v353
    %v355 = vlog2.pop %v352
    %v356 = vmul.f32 %v355, 0.6931472
    %v357 = vlog2.pop %v354
    %v358 = vmul.f32 %v357, 0.6931472
    %s359 = smul.u32 0, 2
    %v360 = vld [vmem:[%s7] sm:$0xff]
    %v361 = vld [vmem:[%s7 + $0x8] sm:$0x3]
    %v362 = vstv %s359
    %v363 = vadd.s32 %v362, %v360
    %v364 = vadd.s32 %v362, %v361
    %vm365 = vcmp.lt.s32.totalorder %v363, 2
    %vm366 = vcmp.lt.s32.totalorder %v364, 2
    %v367 = vsel %vm365, %v356, 0.0
    %v368 = vsel %vm366, %v358, 0.0
    %vm369 = vcmask 7168
    %v370 = vsel %vm369, %v367, 0.0
    %vm371 = vcmask 1024
    %v372 = vsel %vm371, %v368, 0.0
    %v373 = vadd.f32 %v370, %v372
    %374 = vadd.xlane.f32.xlu0 %v373
    %v375 = vpop.xlane.xlu0 %374
    %v376 = vrot.slane %v375, 4
    %v377 = vadd.f32 %v375, %v376
    %v378 = vrot.slane %v377, 2
    %v379 = vadd.f32 %v377, %v378
    %v380 = vrot.slane %v379, 1
    %v381 = vadd.f32 %v379, %v380
    %s382 = vtos %v381
    %v383 = vstv %s382
    %384 = vst [vmem:[#allocation2] sm:$0xff] %v383
    // Predicated region
    $region34: #{tpu_custom_call.1} parent=1 // pred_check
      _
    $region35: #{tpu_custom_call.1} parent=1 // pred_check_branch
      %386 = sbr.rel (0) target = $region37
    $region36: #{tpu_custom_call.1} parent=1 // pred_region
      %s388 = ssub.s32 128, 128
      %389 = vsyncadd [#allocation3], %s388
      %s391 = sshll.u32 [#allocation2], 4
      %s392 = int_to_ptr.vmem [resolvable:$true] %s391
      %394 = dma.vmem_to_hbm [thread:$0]  %s392, 128, %s8, [#allocation3]
    $region37: #{tpu_custom_call.1} parent=1 // pred_fallthru
      _
    // Predicated region
    $region38: #{tpu_custom_call.1} parent=1 // pred_check
      _
    $region39: #{tpu_custom_call.1} parent=1 // pred_check_branch
      %396 = sbr.rel (0) target = $region41
    $region40: #{tpu_custom_call.1} parent=1 // pred_region
      %397 = dma.done [#allocation3], 128
    $region41: #{tpu_custom_call.1} parent=1 // pred_fallthru
      _
    %398 = vsyncpa [#allocation3], 1

</llo_original>
